<compile_context>
chip_gen: v5e
topology: v5e:2x2
jax: 0.10.0
libtpu: 0.0.40
codegen_flags: <defaults>
</compile_context>

<pallas_src>
import functools

import numpy as np
import jax
import jax.numpy as jnp
from jax import lax
from jax.experimental import pallas as pl
from jax.experimental.pallas import tpu as pltpu


def _border_masks(H, W, nb):
    """(4, nb*H*W) f32 validity masks, tiled per image.

    Row 0: left  neighbour (w-1) in bounds   Row 2: row above (h-1) in bounds
    Row 1: right neighbour (w+1) in bounds   Row 3: row below (h+1) in bounds
    They double as guards against pltpu.roll wrapping across row / image
    boundaries on the fused nb*H*W lane axis.
    """
    h = np.arange(H)[:, None]
    w = np.arange(W)[None, :]
    col_l = np.broadcast_to(w >= 1, (H, W))
    col_r = np.broadcast_to(w <= W - 2, (H, W))
    row_t = np.broadcast_to(h >= 1, (H, W))
    row_b = np.broadcast_to(h <= H - 2, (H, W))
    m = np.stack([col_l, col_r, row_t, row_b]).astype(np.float32)
    return jnp.asarray(np.tile(m.reshape(4, H * W), (1, nb)))


def mbconv_kernel(x_ref, mask_ref, w1_ref, b1_ref, wdw_ref, b2_ref,
                  w3_ref, b3_ref, o_ref, *, W):
    """One grid step = one batch block, channels-first, lane axis = nb*H*W.

    x_ref:    (Cin, LW)   activations (lane axis = nb*H*W), MXU dtype
    mask_ref: (4, LW)     [left, right, above, below]-valid border masks (0/1)
    w1_ref:   (Cmid, Cin) 1x1 expansion weights, BN scale folded in
    wdw_ref:  (Cmid, 9)   depthwise taps (col = kh*3+kw), BN scale folded in
    w3_ref:   (Cout, Cmid) 1x1 projection weights, BN scale folded in
    b*_ref:   (C, 1)      per-channel BN biases (lane-broadcast columns)
    o_ref:    (Cout, LW)  output block (lane-dense store)
    """
    LW = x_ref.shape[-1]

    mask = mask_ref[...]
    col_l = mask[0:1, :]
    col_r = mask[1:2, :]
    row_t = mask[2:3, :]
    row_b = mask[3:4, :]
    wdw = wdw_ref[...]

    # ---- inverted_conv: 1x1 conv = one wide MXU matmul + folded BN + ReLU6 ----
    h1 = jnp.dot(w1_ref[...], x_ref[...], preferred_element_type=jnp.float32)
    h1 = jnp.clip(h1 + b1_ref[...], 0.0, 6.0)                 # (Cmid, LW) f32

    # ---- depth_conv: separable 3x3, stride 1, same padding (4 rolls total) ----
    # Horizontal neighbours once (column masks zero row/image-boundary wrap):
    lm = pltpu.roll(h1, shift=1, axis=1) * col_l               # x[h, w-1]
    rm = pltpu.roll(h1, shift=LW - 1, axis=1) * col_r          # x[h, w+1]
    # Per-kernel-row horizontal combines:
    row0 = wdw[:, 0:1] * lm + wdw[:, 1:2] * h1 + wdw[:, 2:3] * rm   # kh = 0
    row1 = wdw[:, 3:4] * lm + wdw[:, 4:5] * h1 + wdw[:, 5:6] * rm   # kh = 1
    row2 = wdw[:, 6:7] * lm + wdw[:, 7:8] * h1 + wdw[:, 8:9] * rm   # kh = 2
    # Vertical combine: +-W lane rolls, row masks applied at output position.
    acc = (row1
           + pltpu.roll(row0, shift=W, axis=1) * row_t         # from row h-1
           + pltpu.roll(row2, shift=LW - W, axis=1) * row_b)   # from row h+1
    h2 = jnp.clip(acc + b2_ref[...], 0.0, 6.0)                 # (Cmid, LW) f32

    # ---- point_conv: 1x1 conv (wide MXU matmul) + folded BN bias (no act) ----
    h3 = jnp.dot(w3_ref[...], h2.astype(w3_ref.dtype),
                 preferred_element_type=jnp.float32)
    o_ref[...] = (h3 + b3_ref[...]).astype(o_ref.dtype)        # lane-dense store


def mbconv_pallas(x_nchw, p, *, mxu_dtype=jnp.bfloat16, batch_block=1,
                  out_dtype=jnp.float32):
    """x_nchw: (N, Cin, H, W) float32 -> (N, Cout, H, W) out_dtype.

    mxu_dtype:   dtype fed to the MXU (bf16 recommended on v6e/v7x; f32 exact).
                 Elementwise math and accumulation stay f32.
    batch_block: images fused per grid step.  Keep N // batch_block >= 2 so the
                 pipeline runs and both v7x TensorCores are used.
    out_dtype:   set to jnp.bfloat16 if the consumer accepts it (halves output
                 writeback HBM traffic; stores stay lane-dense).
    """
    N, Cin, H, W = x_nchw.shape
    Cmid = p["w1k"].shape[0]
    Cout = p["w3k"].shape[0]
    HW = H * W
    assert N % batch_block == 0, "batch_block must divide N"
    nb = batch_block
    LW = nb * HW                    # lane extent per grid step (multiple of 128)
    n_steps = N // nb

    # Channels-first, lane-dense layout for the whole batch: (Cin, N*H*W).
    # XLA fuses the bf16 convert into this single transpose pass, so there is
    # no separate HBM round-trip over x just for the cast.
    x2d = jnp.transpose(x_nchw, (1, 0, 2, 3)).reshape(Cin, N * HW).astype(mxu_dtype)

    masks = _border_masks(H, W, nb)                     # (4, LW) f32
    w1 = p["w1k"].astype(mxu_dtype)                     # (Cmid, Cin)
    w3 = p["w3k"].astype(mxu_dtype)                     # (Cout, Cmid)
    wdw = p["wdwk"].astype(jnp.float32)                 # (Cmid, 9)

    kernel = functools.partial(mbconv_kernel, W=W)

    # Explicit scoped-VMEM limit (v5e default is only 16 MiB) with headroom,
    # capped below v7x's 64 MiB physical.
    x_bytes = Cin * LW * jnp.dtype(mxu_dtype).itemsize
    o_bytes = Cout * LW * jnp.dtype(out_dtype).itemsize
    m_bytes = 4 * LW * 4
    tmp_bytes = 8 * Cmid * LW * 4   # rough bound on live f32 temporaries
    vmem_limit = int(min(max(2 * (x_bytes + o_bytes + m_bytes) + tmp_bytes,
                             32 * 1024 * 1024),
                         48 * 1024 * 1024))

    cost = pl.CostEstimate(
        flops=2 * N * HW * (Cin * Cmid + 9 * Cmid + Cmid * Cout),
        transcendentals=0,
        bytes_accessed=int(Cin * N * HW * jnp.dtype(mxu_dtype).itemsize
                           + Cout * N * HW * jnp.dtype(out_dtype).itemsize
                           + (Cmid * Cin + 9 * Cmid + Cout * Cmid + 4 * LW) * 4),
    )

    grid_spec = pltpu.PrefetchScalarGridSpec(
        num_scalar_prefetch=0,
        grid=(n_steps,),
        in_specs=[
            pl.BlockSpec((Cin, LW), lambda n: (0, n)),     # activations
            pl.BlockSpec((4, LW), lambda n: (0, 0)),       # border masks
            pl.BlockSpec((Cmid, Cin), lambda n: (0, 0)),   # w1 (BN folded)
            pl.BlockSpec((Cmid, 1), lambda n: (0, 0)),     # b1
            pl.BlockSpec((Cmid, 9), lambda n: (0, 0)),     # depthwise taps
            pl.BlockSpec((Cmid, 1), lambda n: (0, 0)),     # b2
            pl.BlockSpec((Cout, Cmid), lambda n: (0, 0)),  # w3 (BN folded)
            pl.BlockSpec((Cout, 1), lambda n: (0, 0)),     # b3
        ],
        out_specs=pl.BlockSpec((Cout, LW), lambda n: (0, n)),
    )

    out = pl.pallas_call(
        kernel,
        out_shape=jax.ShapeDtypeStruct((Cout, N * HW), out_dtype),
        grid_spec=grid_spec,
        compiler_params=pltpu.CompilerParams(
            dimension_semantics=("parallel",),
            vmem_limit_bytes=vmem_limit),
        cost_estimate=cost,
    )(x2d, masks, w1, p["b1k"], wdw, p["b2k"], w3, p["b3k"])

    # (Cout, N*H*W) -> (N, Cout, H, W): one output transpose pass.
    return jnp.transpose(out.reshape(Cout, N, H, W), (1, 0, 2, 3))


def init_params(key, cin, cout, cmid, eps=1e-5):
    """Deterministic synthetic parameters (shapes match the PyTorch module)."""
    ks = jax.random.split(key, 6)
    w1_oihw = 0.2 * jax.random.normal(ks[0], (cmid, cin, 1, 1), jnp.float32)
    wdw_oihw = 0.2 * jax.random.normal(ks[1], (cmid, 1, 3, 3), jnp.float32)
    w3_oihw = 0.2 * jax.random.normal(ks[2], (cout, cmid, 1, 1), jnp.float32)

    def bn_fold(k, c):
        k1, k2, k3, k4 = jax.random.split(k, 4)
        gamma = 1.0 + 0.2 * jax.random.normal(k1, (c,), jnp.float32)
        beta = 0.1 * jax.random.normal(k2, (c,), jnp.float32)
        mean = 0.1 * jax.random.normal(k3, (c,), jnp.float32)
        var = jax.random.uniform(k4, (c,), jnp.float32, minval=0.5, maxval=1.5)
        scale = gamma / jnp.sqrt(var + eps)
        bias = beta - mean * scale
        return scale, bias

    s1, b1 = bn_fold(ks[3], cmid)
    s2, b2 = bn_fold(ks[4], cmid)
    s3, b3 = bn_fold(ks[5], cout)

    return {
        # PyTorch-layout weights + folded BN vectors (for the pure-JAX reference)
        "w1_oihw": w1_oihw, "wdw_oihw": wdw_oihw, "w3_oihw": w3_oihw,
        "s1v": s1, "b1v": b1, "s2v": s2, "b2v": b2, "s3v": s3, "b3v": b3,
        # Kernel-layout weights with the BN scale folded in (channels-first)
        "w1k": w1_oihw[:, :, 0, 0] * s1[:, None],                      # (Cmid, Cin)
        "wdwk": wdw_oihw[:, 0, :, :].reshape(cmid, 9) * s2[:, None],   # (Cmid, 9)
        "w3k": w3_oihw[:, :, 0, 0] * s3[:, None],                      # (Cout, Cmid)
        # Per-channel biases as lane-broadcastable column vectors
        "b1k": b1.reshape(-1, 1), "b2k": b2.reshape(-1, 1),
        "b3k": b3.reshape(-1, 1),
    }


def mbconv_ref(x, p):
    """Pure-JAX reference matching PyTorch eval-mode MBConv (NCHW)."""
    dn = ("NCHW", "OIHW", "NCHW")

    def bn(y, s, b):
        return y * s[None, :, None, None] + b[None, :, None, None]

    y = lax.conv_general_dilated(x, p["w1_oihw"], (1, 1), "VALID",
                                 dimension_numbers=dn)
    y = jnp.clip(bn(y, p["s1v"], p["b1v"]), 0.0, 6.0)
    y = lax.conv_general_dilated(y, p["wdw_oihw"], (1, 1), ((1, 1), (1, 1)),
                                 dimension_numbers=dn,
                                 feature_group_count=y.shape[1])
    y = jnp.clip(bn(y, p["s2v"], p["b2v"]), 0.0, 6.0)
    y = lax.conv_general_dilated(y, p["w3_oihw"], (1, 1), "VALID",
                                 dimension_numbers=dn)
    y = bn(y, p["s3v"], p["b3v"])
    return y


if __name__ == "__main__":
    # MBConv(4, 8, kernel_size=3, stride=1, expand_ratio=6) -> mid_channels = 24.
    N, Cin, H, W = 2, 4, 16, 16
    Cout, expand_ratio = 8, 6
    Cmid = round(Cin * expand_ratio)

    key = jax.random.PRNGKey(0)
    kx, kp = jax.random.split(key)
    x = jax.random.normal(kx, (N, Cin, H, W), jnp.float32)
    params = init_params(kp, Cin, Cout, Cmid)

    ref = jax.block_until_ready(mbconv_ref(x, params))

    # Exact-semantics check: f32 MXU path, grid=(N,) (one image per step).
    fwd_f32 = jax.jit(lambda xx, pp: mbconv_pallas(
        xx, pp, mxu_dtype=jnp.float32, batch_block=1))
    out_f32 = jax.block_until_ready(fwd_f32(x, params))
    np.testing.assert_allclose(np.asarray(out_f32), np.asarray(ref),
                               rtol=1e-4, atol=1e-4)

    # Perf path: bf16 MXU inputs (f32 accumulation/elementwise).  batch_block=1
    # keeps the grid extent >= 2 (pipelining + both v7x TensorCores).
    fwd_bf16 = jax.jit(lambda xx, pp: mbconv_pallas(
        xx, pp, mxu_dtype=jnp.bfloat16, batch_block=1))
    out_bf16 = jax.block_until_ready(fwd_bf16(x, params))
    np.testing.assert_allclose(np.asarray(out_bf16), np.asarray(ref),
                               rtol=5e-2, atol=1e-1)

    print("KERNEL_OK")
</pallas_src>

<mosaic_0001>
module attributes {stable_mosaic.version = 11 : i64} {
  func.func @mbconv_kernel(%arg0: i32, %arg1: memref<4x256xf32, #tpu.memory_space<vmem>>, %arg2: memref<4x256xf32, #tpu.memory_space<vmem>>, %arg3: memref<24x4xf32, #tpu.memory_space<vmem>>, %arg4: memref<24x1xf32, #tpu.memory_space<vmem>>, %arg5: memref<24x9xf32, #tpu.memory_space<vmem>>, %arg6: memref<24x1xf32, #tpu.memory_space<vmem>>, %arg7: memref<8x24xf32, #tpu.memory_space<vmem>>, %arg8: memref<8x1xf32, #tpu.memory_space<vmem>>, %arg9: memref<8x256xf32, #tpu.memory_space<vmem>>) attributes {dimension_semantics = [#tpu.dimension_semantics<parallel>], iteration_bounds = array<i64: 2>, scalar_prefetch = 0 : i64, scratch_operands = 0 : i64, tpu.core_type = #tpu.core_type<tc>, window_params = [{transform_indices = @transform_0, window_bounds = array<i64: 4, 256>}, {pipeline_mode = #tpu.pipeline_mode<synchronous>, transform_indices = @transform_1, window_bounds = array<i64: 4, 256>}, {pipeline_mode = #tpu.pipeline_mode<synchronous>, transform_indices = @transform_2, window_bounds = array<i64: 24, 4>}, {pipeline_mode = #tpu.pipeline_mode<synchronous>, transform_indices = @transform_3, window_bounds = array<i64: 24, 1>}, {pipeline_mode = #tpu.pipeline_mode<synchronous>, transform_indices = @transform_4, window_bounds = array<i64: 24, 9>}, {pipeline_mode = #tpu.pipeline_mode<synchronous>, transform_indices = @transform_5, window_bounds = array<i64: 24, 1>}, {pipeline_mode = #tpu.pipeline_mode<synchronous>, transform_indices = @transform_6, window_bounds = array<i64: 8, 24>}, {pipeline_mode = #tpu.pipeline_mode<synchronous>, transform_indices = @transform_7, window_bounds = array<i64: 8, 1>}, {transform_indices = @transform_8, window_bounds = array<i64: 8, 256>}]} {
    %c0 = arith.constant 0 : index
    %c0_0 = arith.constant 0 : index
    %0 = vector.load %arg2[%c0, %c0_0] : memref<4x256xf32, #tpu.memory_space<vmem>>, vector<4x256xf32>
    %1 = vector.extract_strided_slice %0 {offsets = [0, 0], sizes = [1, 256], strides = [1, 1]} : vector<4x256xf32> to vector<1x256xf32>
    %2 = vector.extract_strided_slice %0 {offsets = [1, 0], sizes = [1, 256], strides = [1, 1]} : vector<4x256xf32> to vector<1x256xf32>
    %3 = vector.extract_strided_slice %0 {offsets = [2, 0], sizes = [1, 256], strides = [1, 1]} : vector<4x256xf32> to vector<1x256xf32>
    %4 = vector.extract_strided_slice %0 {offsets = [3, 0], sizes = [1, 256], strides = [1, 1]} : vector<4x256xf32> to vector<1x256xf32>
    %c0_1 = arith.constant 0 : index
    %c0_2 = arith.constant 0 : index
    %5 = vector.load %arg5[%c0_1, %c0_2] : memref<24x9xf32, #tpu.memory_space<vmem>>, vector<24x9xf32>
    %c0_3 = arith.constant 0 : index
    %c0_4 = arith.constant 0 : index
    %6 = vector.load %arg3[%c0_3, %c0_4] : memref<24x4xf32, #tpu.memory_space<vmem>>, vector<24x4xf32>
    %c0_5 = arith.constant 0 : index
    %c0_6 = arith.constant 0 : index
    %7 = vector.load %arg1[%c0_5, %c0_6] : memref<4x256xf32, #tpu.memory_space<vmem>>, vector<4x256xf32>
    %cst = arith.constant dense<0.000000e+00> : vector<24x256xf32>
    %8 = tpu.matmul %6, %7, %cst {dimension_numbers = #tpu.dot_dimension_numbers<[1], [0], [0], [1], [0, 0, 1, 1], [], []>} : vector<24x4xf32>, vector<4x256xf32>, vector<24x256xf32> -> vector<24x256xf32>
    %c0_7 = arith.constant 0 : index
    %c0_8 = arith.constant 0 : index
    %9 = vector.load %arg4[%c0_7, %c0_8] : memref<24x1xf32, #tpu.memory_space<vmem>>, vector<24x1xf32>
    %10 = vector.broadcast %9 : vector<24x1xf32> to vector<24x256xf32>
    %11 = arith.addf %8, %10 : vector<24x256xf32>
    %cst_9 = arith.constant 0.000000e+00 : f32
    %cst_10 = arith.constant 6.000000e+00 : f32
    %12 = vector.broadcast %cst_9 : f32 to vector<24x256xf32>
    %13 = arith.maximumf %12, %11 : vector<24x256xf32>
    %14 = vector.broadcast %cst_10 : f32 to vector<24x256xf32>
    %15 = arith.minimumf %14, %13 : vector<24x256xf32>
    %c1_i32 = arith.constant 1 : i32
    %16 = tpu.dynamic_rotate %15 by %c1_i32 dim 1 : vector<24x256xf32>, i32 -> vector<24x256xf32>
    %17 = vector.broadcast %1 : vector<1x256xf32> to vector<24x256xf32>
    %18 = arith.mulf %16, %17 : vector<24x256xf32>
    %c255_i32 = arith.constant 255 : i32
    %19 = tpu.dynamic_rotate %15 by %c255_i32 dim 1 : vector<24x256xf32>, i32 -> vector<24x256xf32>
    %20 = vector.broadcast %2 : vector<1x256xf32> to vector<24x256xf32>
    %21 = arith.mulf %19, %20 : vector<24x256xf32>
    %22 = vector.extract_strided_slice %5 {offsets = [0, 0], sizes = [24, 1], strides = [1, 1]} : vector<24x9xf32> to vector<24x1xf32>
    %23 = vector.broadcast %22 : vector<24x1xf32> to vector<24x256xf32>
    %24 = arith.mulf %23, %18 : vector<24x256xf32>
    %25 = vector.extract_strided_slice %5 {offsets = [0, 1], sizes = [24, 1], strides = [1, 1]} : vector<24x9xf32> to vector<24x1xf32>
    %26 = vector.broadcast %25 : vector<24x1xf32> to vector<24x256xf32>
    %27 = arith.mulf %26, %15 : vector<24x256xf32>
    %28 = arith.addf %24, %27 : vector<24x256xf32>
    %29 = vector.extract_strided_slice %5 {offsets = [0, 2], sizes = [24, 1], strides = [1, 1]} : vector<24x9xf32> to vector<24x1xf32>
    %30 = vector.broadcast %29 : vector<24x1xf32> to vector<24x256xf32>
    %31 = arith.mulf %30, %21 : vector<24x256xf32>
    %32 = arith.addf %28, %31 : vector<24x256xf32>
    %33 = vector.extract_strided_slice %5 {offsets = [0, 3], sizes = [24, 1], strides = [1, 1]} : vector<24x9xf32> to vector<24x1xf32>
    %34 = vector.broadcast %33 : vector<24x1xf32> to vector<24x256xf32>
    %35 = arith.mulf %34, %18 : vector<24x256xf32>
    %36 = vector.extract_strided_slice %5 {offsets = [0, 4], sizes = [24, 1], strides = [1, 1]} : vector<24x9xf32> to vector<24x1xf32>
    %37 = vector.broadcast %36 : vector<24x1xf32> to vector<24x256xf32>
    %38 = arith.mulf %37, %15 : vector<24x256xf32>
    %39 = arith.addf %35, %38 : vector<24x256xf32>
    %40 = vector.extract_strided_slice %5 {offsets = [0, 5], sizes = [24, 1], strides = [1, 1]} : vector<24x9xf32> to vector<24x1xf32>
    %41 = vector.broadcast %40 : vector<24x1xf32> to vector<24x256xf32>
    %42 = arith.mulf %41, %21 : vector<24x256xf32>
    %43 = arith.addf %39, %42 : vector<24x256xf32>
    %44 = vector.extract_strided_slice %5 {offsets = [0, 6], sizes = [24, 1], strides = [1, 1]} : vector<24x9xf32> to vector<24x1xf32>
    %45 = vector.broadcast %44 : vector<24x1xf32> to vector<24x256xf32>
    %46 = arith.mulf %45, %18 : vector<24x256xf32>
    %47 = vector.extract_strided_slice %5 {offsets = [0, 7], sizes = [24, 1], strides = [1, 1]} : vector<24x9xf32> to vector<24x1xf32>
    %48 = vector.broadcast %47 : vector<24x1xf32> to vector<24x256xf32>
    %49 = arith.mulf %48, %15 : vector<24x256xf32>
    %50 = arith.addf %46, %49 : vector<24x256xf32>
    %51 = vector.extract_strided_slice %5 {offsets = [0, 8], sizes = [24, 1], strides = [1, 1]} : vector<24x9xf32> to vector<24x1xf32>
    %52 = vector.broadcast %51 : vector<24x1xf32> to vector<24x256xf32>
    %53 = arith.mulf %52, %21 : vector<24x256xf32>
    %54 = arith.addf %50, %53 : vector<24x256xf32>
    %c16_i32 = arith.constant 16 : i32
    %55 = tpu.dynamic_rotate %32 by %c16_i32 dim 1 : vector<24x256xf32>, i32 -> vector<24x256xf32>
    %56 = vector.broadcast %3 : vector<1x256xf32> to vector<24x256xf32>
    %57 = arith.mulf %55, %56 : vector<24x256xf32>
    %58 = arith.addf %43, %57 : vector<24x256xf32>
    %c240_i32 = arith.constant 240 : i32
    %59 = tpu.dynamic_rotate %54 by %c240_i32 dim 1 : vector<24x256xf32>, i32 -> vector<24x256xf32>
    %60 = vector.broadcast %4 : vector<1x256xf32> to vector<24x256xf32>
    %61 = arith.mulf %59, %60 : vector<24x256xf32>
    %62 = arith.addf %58, %61 : vector<24x256xf32>
    %c0_11 = arith.constant 0 : index
    %c0_12 = arith.constant 0 : index
    %63 = vector.load %arg6[%c0_11, %c0_12] : memref<24x1xf32, #tpu.memory_space<vmem>>, vector<24x1xf32>
    %64 = vector.broadcast %63 : vector<24x1xf32> to vector<24x256xf32>
    %65 = arith.addf %62, %64 : vector<24x256xf32>
    %cst_13 = arith.constant 0.000000e+00 : f32
    %cst_14 = arith.constant 6.000000e+00 : f32
    %66 = vector.broadcast %cst_13 : f32 to vector<24x256xf32>
    %67 = arith.maximumf %66, %65 : vector<24x256xf32>
    %68 = vector.broadcast %cst_14 : f32 to vector<24x256xf32>
    %69 = arith.minimumf %68, %67 : vector<24x256xf32>
    %c0_15 = arith.constant 0 : index
    %c0_16 = arith.constant 0 : index
    %70 = vector.load %arg7[%c0_15, %c0_16] : memref<8x24xf32, #tpu.memory_space<vmem>>, vector<8x24xf32>
    %cst_17 = arith.constant dense<0.000000e+00> : vector<8x256xf32>
    %71 = tpu.matmul %70, %69, %cst_17 {dimension_numbers = #tpu.dot_dimension_numbers<[1], [0], [0], [1], [0, 0, 1, 1], [], []>} : vector<8x24xf32>, vector<24x256xf32>, vector<8x256xf32> -> vector<8x256xf32>
    %c0_18 = arith.constant 0 : index
    %c0_19 = arith.constant 0 : index
    %72 = vector.load %arg8[%c0_18, %c0_19] : memref<8x1xf32, #tpu.memory_space<vmem>>, vector<8x1xf32>
    %73 = vector.broadcast %72 : vector<8x1xf32> to vector<8x256xf32>
    %74 = arith.addf %71, %73 : vector<8x256xf32>
    %c0_20 = arith.constant 0 : index
    %c0_21 = arith.constant 0 : index
    %75 = vector.load %arg9[%c0_20, %c0_21] : memref<8x256xf32, #tpu.memory_space<vmem>>, vector<8x256xf32>
    tpu.vector_store %arg9[%c0_20, %c0_21], %74 {strides = array<i32>} : memref<8x256xf32, #tpu.memory_space<vmem>>, vector<8x256xf32>,
    return
  }
  func.func @transform_0(%arg0: i32) -> (i32, i32) {
    %c0_i32 = arith.constant 0 : i32
    %c0_i32_0 = arith.constant 0 : i32
    return %c0_i32, %arg0 : i32, i32
  }
  func.func @transform_1(%arg0: i32) -> (i32, i32) {
    %c0_i32 = arith.constant 0 : i32
    %c0_i32_0 = arith.constant 0 : i32
    %c0_i32_1 = arith.constant 0 : i32
    return %c0_i32, %c0_i32_0 : i32, i32
  }
  func.func @transform_2(%arg0: i32) -> (i32, i32) {
    %c0_i32 = arith.constant 0 : i32
    %c0_i32_0 = arith.constant 0 : i32
    %c0_i32_1 = arith.constant 0 : i32
    return %c0_i32, %c0_i32_0 : i32, i32
  }
  func.func @transform_3(%arg0: i32) -> (i32, i32) {
    %c0_i32 = arith.constant 0 : i32
    %c0_i32_0 = arith.constant 0 : i32
    %c0_i32_1 = arith.constant 0 : i32
    return %c0_i32, %c0_i32_0 : i32, i32
  }
  func.func @transform_4(%arg0: i32) -> (i32, i32) {
    %c0_i32 = arith.constant 0 : i32
    %c0_i32_0 = arith.constant 0 : i32
    %c0_i32_1 = arith.constant 0 : i32
    return %c0_i32, %c0_i32_0 : i32, i32
  }
  func.func @transform_5(%arg0: i32) -> (i32, i32) {
    %c0_i32 = arith.constant 0 : i32
    %c0_i32_0 = arith.constant 0 : i32
    %c0_i32_1 = arith.constant 0 : i32
    return %c0_i32, %c0_i32_0 : i32, i32
  }
  func.func @transform_6(%arg0: i32) -> (i32, i32) {
    %c0_i32 = arith.constant 0 : i32
    %c0_i32_0 = arith.constant 0 : i32
    %c0_i32_1 = arith.constant 0 : i32
    return %c0_i32, %c0_i32_0 : i32, i32
  }
  func.func @transform_7(%arg0: i32) -> (i32, i32) {
    %c0_i32 = arith.constant 0 : i32
    %c0_i32_0 = arith.constant 0 : i32
    %c0_i32_1 = arith.constant 0 : i32
    return %c0_i32, %c0_i32_0 : i32, i32
  }
  func.func @transform_8(%arg0: i32) -> (i32, i32) {
    %c0_i32 = arith.constant 0 : i32
    %c0_i32_0 = arith.constant 0 : i32
    return %c0_i32, %arg0 : i32, i32
  }
}

</mosaic_0001>

<llo_original>
// kernel: _lambda_.1
$region0: #{_lambda_.1}
  #allocation0 [shape = 'u32[]', space=smem, size = 0x4, offset = 0x4, fixed_abs, tag = 'smem constant byte address 0x4 - core index']
  #allocation1 [shape = 'u32[72,128]{1,0:T(1,128)}', space=vmem, size = 0x9000, scoped, tag = 'internal scratch']
  %s0 = inlined_call_operand.vmem [shape: f32[4,512], index: 0, kind: input, shape index: {}]
  %s1 = inlined_call_operand.vmem [shape: f32[4,256], index: 1, kind: input, shape index: {}]
  %s2 = inlined_call_operand.vmem [shape: f32[24,4], index: 2, kind: input, shape index: {}]
  %s3 = inlined_call_operand.vmem [shape: f32[24,1], index: 3, kind: input, shape index: {}]
  %s4 = inlined_call_operand.vmem [shape: f32[24,9], index: 4, kind: input, shape index: {}]
  %s5 = inlined_call_operand.vmem [shape: f32[24,1], index: 5, kind: input, shape index: {}]
  %s6 = inlined_call_operand.vmem [shape: f32[8,24], index: 6, kind: input, shape index: {}]
  %s7 = inlined_call_operand.vmem [shape: f32[8,1], index: 7, kind: input, shape index: {}]
  %s8 = inlined_call_operand.vmem [shape: f32[8,512], index: 8, kind: output, shape index: {}]
  %s9 = sld [smem:[#allocation0]]
  $region65: #{_lambda_.1} parent=0
    _
  %s11 = ssub.s32 1, %s9
  %s12 = scalar_select 0, %s11, %s9
  loop: start=0, step=1, limit=4
  $region2: #{_lambda_.1} parent=0 // loop_pre_header
    _
  $region3: #{_lambda_.1} parent=0 // loop_header
    %s14 = sphi 0, %s18
    %p15 = scmp.ge.s32.totalorder %s14, 4
    %s24 = sphi 0, %s26
    %s27 = sphi 0, %s24
    %s28 = sphi 0, %s27
    %s44 = sphi 0, %s28
    %s48 = sphi 0, %s48
    %s50 = sphi 0, %s48
    %s51 = sphi 0, %s50
    %s65 = sphi 0, %s51
    %s69 = sphi 0, %s69
    %s71 = sphi 0, %s69
    %s72 = sphi 0, %s71
    %s86 = sphi 0, %s72
    %s90 = sphi 0, %s90
    %s92 = sphi 0, %s90
    %s93 = sphi 0, %s92
    %s107 = sphi 0, %s93
    %s111 = sphi 0, %s111
    %s113 = sphi 0, %s111
    %s114 = sphi 0, %s113
    %s128 = sphi 0, %s114
    %s132 = sphi 0, %s132
    %s134 = sphi 0, %s132
    %s135 = sphi 0, %s134
    %s149 = sphi 0, %s135
    %s153 = sphi 0, %s153
    %s155 = sphi 0, %s153
    %s156 = sphi 0, %s155
    %s170 = sphi 0, %s156
    %s174 = sphi 0, %s174
    %s176 = sphi 0, %s174
    %s177 = sphi 0, %s176
    %s191 = sphi 0, %s177
    %s197 = sphi 0, %s199
    %s200 = sphi 0, %s197
    %s201 = sphi 0, %s200
    %s217 = sphi 0, %s201
  $region4: #{_lambda_.1} parent=0 // loop_header_branch
    %17 = sbr.rel (%p15) target = $region8
  $region5: #{_lambda_.1} parent=0 // loop_body
    %s19 = ssub.s32 %s14, 1
    %s20 = ssub.s32 %s14, 2
    %s21 = sadd.s32 %s14, 1
    %s22 = ssub.s32 %s14, %s21
    %p23 = scmp.eq.s32.totalorder %s22, 0
    %s25 = sadd.s32 %s24, 1
    %s26 = scalar_select %p23, %s24, %s25
    %p29 = pneg %p23
    %p30 = scmp.eq.s32.totalorder %s14, 1
    %p31 = por %p29, %p30
    %p32 = scmp.ne.s32.totalorder %s24, %s27
    %p33 = scmp.eq.s32.totalorder %s14, 0
    %p34 = por %p32, %p33
    %p35 = scmp.ne.s32.totalorder %s24, %s27
    %p36 = scmp.eq.s32.totalorder %s19, 1
    %p37 = por %p35, %p36
    %p38 = scmp.ne.s32.totalorder %s27, %s28
    %p39 = scmp.eq.s32.totalorder %s19, 0
    %p40 = por %p38, %p39
    %p41 = scmp.ne.s32.totalorder %s27, %s28
    %p42 = scmp.eq.s32.totalorder %s20, 1
    %p43 = por %p41, %p42
    %p45 = scmp.ne.s32.totalorder %s28, %s44
    %p46 = scmp.eq.s32.totalorder %s20, 0
    %p47 = por %p45, %p46
    %s49 = sadd.s32 %s48, 1
    %p52 = scmp.eq.s32.totalorder %s14, 1
    %p53 = scmp.ne.s32.totalorder %s48, %s50
    %p54 = scmp.eq.s32.totalorder %s14, 0
    %p55 = por %p53, %p54
    %p56 = scmp.ne.s32.totalorder %s48, %s50
    %p57 = scmp.eq.s32.totalorder %s19, 1
    %p58 = por %p56, %p57
    %p59 = scmp.ne.s32.totalorder %s50, %s51
    %p60 = scmp.eq.s32.totalorder %s19, 0
    %p61 = por %p59, %p60
    %p62 = scmp.ne.s32.totalorder %s50, %s51
    %p63 = scmp.eq.s32.totalorder %s20, 1
    %p64 = por %p62, %p63
    %p66 = scmp.ne.s32.totalorder %s51, %s65
    %p67 = scmp.eq.s32.totalorder %s20, 0
    %p68 = por %p66, %p67
    %s70 = sadd.s32 %s69, 1
    %p73 = scmp.eq.s32.totalorder %s14, 1
    %p74 = scmp.ne.s32.totalorder %s69, %s71
    %p75 = scmp.eq.s32.totalorder %s14, 0
    %p76 = por %p74, %p75
    %p77 = scmp.ne.s32.totalorder %s69, %s71
    %p78 = scmp.eq.s32.totalorder %s19, 1
    %p79 = por %p77, %p78
    %p80 = scmp.ne.s32.totalorder %s71, %s72
    %p81 = scmp.eq.s32.totalorder %s19, 0
    %p82 = por %p80, %p81
    %p83 = scmp.ne.s32.totalorder %s71, %s72
    %p84 = scmp.eq.s32.totalorder %s20, 1
    %p85 = por %p83, %p84
    %p87 = scmp.ne.s32.totalorder %s72, %s86
    %p88 = scmp.eq.s32.totalorder %s20, 0
    %p89 = por %p87, %p88
    %s91 = sadd.s32 %s90, 1
    %p94 = scmp.eq.s32.totalorder %s14, 1
    %p95 = scmp.ne.s32.totalorder %s90, %s92
    %p96 = scmp.eq.s32.totalorder %s14, 0
    %p97 = por %p95, %p96
    %p98 = scmp.ne.s32.totalorder %s90, %s92
    %p99 = scmp.eq.s32.totalorder %s19, 1
    %p100 = por %p98, %p99
    %p101 = scmp.ne.s32.totalorder %s92, %s93
    %p102 = scmp.eq.s32.totalorder %s19, 0
    %p103 = por %p101, %p102
    %p104 = scmp.ne.s32.totalorder %s92, %s93
    %p105 = scmp.eq.s32.totalorder %s20, 1
    %p106 = por %p104, %p105
    %p108 = scmp.ne.s32.totalorder %s93, %s107
    %p109 = scmp.eq.s32.totalorder %s20, 0
    %p110 = por %p108, %p109
    %s112 = sadd.s32 %s111, 1
    %p115 = scmp.eq.s32.totalorder %s14, 1
    %p116 = scmp.ne.s32.totalorder %s111, %s113
    %p117 = scmp.eq.s32.totalorder %s14, 0
    %p118 = por %p116, %p117
    %p119 = scmp.ne.s32.totalorder %s111, %s113
    %p120 = scmp.eq.s32.totalorder %s19, 1
    %p121 = por %p119, %p120
    %p122 = scmp.ne.s32.totalorder %s113, %s114
    %p123 = scmp.eq.s32.totalorder %s19, 0
    %p124 = por %p122, %p123
    %p125 = scmp.ne.s32.totalorder %s113, %s114
    %p126 = scmp.eq.s32.totalorder %s20, 1
    %p127 = por %p125, %p126
    %p129 = scmp.ne.s32.totalorder %s114, %s128
    %p130 = scmp.eq.s32.totalorder %s20, 0
    %p131 = por %p129, %p130
    %s133 = sadd.s32 %s132, 1
    %p136 = scmp.eq.s32.totalorder %s14, 1
    %p137 = scmp.ne.s32.totalorder %s132, %s134
    %p138 = scmp.eq.s32.totalorder %s14, 0
    %p139 = por %p137, %p138
    %p140 = scmp.ne.s32.totalorder %s132, %s134
    %p141 = scmp.eq.s32.totalorder %s19, 1
    %p142 = por %p140, %p141
    %p143 = scmp.ne.s32.totalorder %s134, %s135
    %p144 = scmp.eq.s32.totalorder %s19, 0
    %p145 = por %p143, %p144
    %p146 = scmp.ne.s32.totalorder %s134, %s135
    %p147 = scmp.eq.s32.totalorder %s20, 1
    %p148 = por %p146, %p147
    %p150 = scmp.ne.s32.totalorder %s135, %s149
    %p151 = scmp.eq.s32.totalorder %s20, 0
    %p152 = por %p150, %p151
    %s154 = sadd.s32 %s153, 1
    %p157 = scmp.eq.s32.totalorder %s14, 1
    %p158 = scmp.ne.s32.totalorder %s153, %s155
    %p159 = scmp.eq.s32.totalorder %s14, 0
    %p160 = por %p158, %p159
    %p161 = scmp.ne.s32.totalorder %s153, %s155
    %p162 = scmp.eq.s32.totalorder %s19, 1
    %p163 = por %p161, %p162
    %p164 = scmp.ne.s32.totalorder %s155, %s156
    %p165 = scmp.eq.s32.totalorder %s19, 0
    %p166 = por %p164, %p165
    %p167 = scmp.ne.s32.totalorder %s155, %s156
    %p168 = scmp.eq.s32.totalorder %s20, 1
    %p169 = por %p167, %p168
    %p171 = scmp.ne.s32.totalorder %s156, %s170
    %p172 = scmp.eq.s32.totalorder %s20, 0
    %p173 = por %p171, %p172
    %s175 = sadd.s32 %s174, 1
    %p178 = scmp.eq.s32.totalorder %s14, 1
    %p179 = scmp.ne.s32.totalorder %s174, %s176
    %p180 = scmp.eq.s32.totalorder %s14, 0
    %p181 = por %p179, %p180
    %p182 = scmp.ne.s32.totalorder %s174, %s176
    %p183 = scmp.eq.s32.totalorder %s19, 1
    %p184 = por %p182, %p183
    %p185 = scmp.ne.s32.totalorder %s176, %s177
    %p186 = scmp.eq.s32.totalorder %s19, 0
    %p187 = por %p185, %p186
    %p188 = scmp.ne.s32.totalorder %s176, %s177
    %p189 = scmp.eq.s32.totalorder %s20, 1
    %p190 = por %p188, %p189
    %p192 = scmp.ne.s32.totalorder %s177, %s191
    %p193 = scmp.eq.s32.totalorder %s20, 0
    %p194 = por %p192, %p193
    %s195 = ssub.s32 %s14, %s21
    %p196 = scmp.eq.s32.totalorder %s195, 0
    %s198 = sadd.s32 %s197, 1
    %s199 = scalar_select %p196, %s197, %s198
    %p202 = pneg %p196
    %p203 = scmp.eq.s32.totalorder %s14, 1
    %p204 = por %p202, %p203
    %p205 = scmp.ne.s32.totalorder %s197, %s200
    %p206 = scmp.eq.s32.totalorder %s14, 0
    %p207 = por %p205, %p206
    %p208 = scmp.ne.s32.totalorder %s197, %s200
    %p209 = scmp.eq.s32.totalorder %s19, 1
    %p210 = por %p208, %p209
    %p211 = scmp.ne.s32.totalorder %s200, %s201
    %p212 = scmp.eq.s32.totalorder %s19, 0
    %p213 = por %p211, %p212
    %p214 = scmp.ne.s32.totalorder %s200, %s201
    %p215 = scmp.eq.s32.totalorder %s20, 1
    %p216 = por %p214, %p215
    %p218 = scmp.ne.s32.totalorder %s201, %s217
    %p219 = scmp.eq.s32.totalorder %s20, 0
    %p220 = por %p218, %p219
    %p221 = scmp.le.s32.totalorder 1, %s14
    %p222 = scmp.lt.s32.totalorder %s14, 3
    %p223 = pnand %p221, %p222
    %p224 = pneg %p223
    // Predicated region
    $region9: #{_lambda_.1} parent=5 // pred_check
      _
    $region10: #{_lambda_.1} parent=5 // pred_check_branch
      %226 = sbr.rel (%p223) target = $region12
    $region11: #{_lambda_.1} parent=5 // pred_region
      %s227 = ssub.s32 %s14, 1
      // Predicated region
      $region13: #{_lambda_.1} parent=11 // pred_check
        %p228 = pneg %p61
      $region14: #{_lambda_.1} parent=11 // pred_check_branch
        %230 = sbr.rel (%p228) target = $region16
      $region15: #{_lambda_.1} parent=11 // pred_region
        _
      $region16: #{_lambda_.1} parent=11 // pred_fallthru
        _
      // Predicated region
      $region17: #{_lambda_.1} parent=11 // pred_check
        %p231 = pneg %p82
      $region18: #{_lambda_.1} parent=11 // pred_check_branch
        %233 = sbr.rel (%p231) target = $region20
      $region19: #{_lambda_.1} parent=11 // pred_region
        _
      $region20: #{_lambda_.1} parent=11 // pred_fallthru
        _
      // Predicated region
      $region21: #{_lambda_.1} parent=11 // pred_check
        %p234 = pneg %p103
      $region22: #{_lambda_.1} parent=11 // pred_check_branch
        %236 = sbr.rel (%p234) target = $region24
      $region23: #{_lambda_.1} parent=11 // pred_region
        _
      $region24: #{_lambda_.1} parent=11 // pred_fallthru
        _
      // Predicated region
      $region25: #{_lambda_.1} parent=11 // pred_check
        %p237 = pneg %p124
      $region26: #{_lambda_.1} parent=11 // pred_check_branch
        %239 = sbr.rel (%p237) target = $region28
      $region27: #{_lambda_.1} parent=11 // pred_region
        _
      $region28: #{_lambda_.1} parent=11 // pred_fallthru
        _
      // Predicated region
      $region29: #{_lambda_.1} parent=11 // pred_check
        %p240 = pneg %p145
      $region30: #{_lambda_.1} parent=11 // pred_check_branch
        %242 = sbr.rel (%p240) target = $region32
      $region31: #{_lambda_.1} parent=11 // pred_region
        _
      $region32: #{_lambda_.1} parent=11 // pred_fallthru
        _
      // Predicated region
      $region33: #{_lambda_.1} parent=11 // pred_check
        %p243 = pneg %p166
      $region34: #{_lambda_.1} parent=11 // pred_check_branch
        %245 = sbr.rel (%p243) target = $region36
      $region35: #{_lambda_.1} parent=11 // pred_region
        _
      $region36: #{_lambda_.1} parent=11 // pred_fallthru
        _
      // Predicated region
      $region37: #{_lambda_.1} parent=11 // pred_check
        %p246 = pneg %p187
      $region38: #{_lambda_.1} parent=11 // pred_check_branch
        %248 = sbr.rel (%p246) target = $region40
      $region39: #{_lambda_.1} parent=11 // pred_region
        _
      $region40: #{_lambda_.1} parent=11 // pred_fallthru
        _
    $region12: #{_lambda_.1} parent=5 // pred_fallthru
      _
    %p249 = scmp.lt.s32.totalorder %s14, 2
    // Predicated region
    $region41: #{_lambda_.1} parent=5 // pred_check
      %p250 = pneg %p249
    $region42: #{_lambda_.1} parent=5 // pred_check_branch
      %252 = sbr.rel (%p250) target = $region44
    $region43: #{_lambda_.1} parent=5 // pred_region
      // Predicated region
      $region45: #{_lambda_.1} parent=43 // pred_check
        %p253 = pneg %p34
      $region46: #{_lambda_.1} parent=43 // pred_check_branch
        %255 = sbr.rel (%p253) target = $region48
      $region47: #{_lambda_.1} parent=43 // pred_region
        %s256 = smul.u32 2, %s14
        %p257 = scmp.lt.s32.totalorder %s256, 3
        %s258 = scalar_select %p257, %s256, 3
        %s259 = smul.addr %s258, 4
        %s260 = scalar_lea.vmem %s0, %s259
        %s261 = smul.u32 2, %s14
      $region48: #{_lambda_.1} parent=43 // pred_fallthru
        _
    $region44: #{_lambda_.1} parent=5 // pred_fallthru
      _
    %p262 = scmp.le.s32.totalorder 1, %s14
    %p263 = scmp.lt.s32.totalorder %s14, 3
    %p264 = pnand %p262, %p263
    %p265 = pneg %p264
    // Predicated region
    $region49: #{_lambda_.1} parent=5 // pred_check
      _
    $region50: #{_lambda_.1} parent=5 // pred_check_branch
      %267 = sbr.rel (%p264) target = $region52
    $region51: #{_lambda_.1} parent=5 // pred_region
      %s268 = ssub.s32 %s14, 1
      %s269 = smul.u32 2, %s19
      %p270 = scmp.lt.s32.totalorder %s269, 3
      %s271 = scalar_select %p270, %s269, 3
      %s272 = smul.addr %s271, 4
      %s273 = scalar_lea.vmem %s0, %s272
      %p274 = pneg %p40
      %p275 = pneg %p37
      %p276 = pneg %p61
      %p277 = pneg %p58
      %p278 = pneg %p82
      %p279 = pneg %p79
      %p280 = pneg %p103
      %p281 = pneg %p100
      %p282 = pneg %p124
      %p283 = pneg %p121
      %p284 = pneg %p145
      %p285 = pneg %p142
      %p286 = pneg %p166
      %p287 = pneg %p163
      %p288 = pneg %p187
      %p289 = pneg %p184
      %p290 = pneg %p213
      %p291 = pneg %p210
      %s292 = smul.u32 2, %s19
      %p293 = scmp.lt.s32.totalorder %s292, 3
      %s294 = scalar_select %p293, %s292, 3
      %s295 = smul.addr %s294, 8
      %s296 = scalar_lea.vmem %s8, %s295
      %s297 = smul.u32 2, %s19
      %p298 = scmp.lt.s32.totalorder %s297, 3
      %s299 = scalar_select %p298, %s297, 3
      %s300 = smul.addr %s299, 4
      %s301 = scalar_lea.vmem %s0, %s300
      %s302 = smul.u32 2, %s19
      %s303 = smul.u32 2, %s19
      %p304 = scmp.lt.s32.totalorder %s303, 3
      %s305 = scalar_select %p304, %s303, 3
      %s306 = smul.addr %s305, 8
      %s307 = scalar_lea.vmem %s8, %s306
      %s308 = smul.u32 2, %s19
      %v309 = vld [vmem:[%s1] sm:$0xff]
      %v310 = vld [vmem:[%s4] sm:$0xff]
      %v311 = vld [vmem:[%s4 + $0x8] sm:$0xff]
      %v312 = vld [vmem:[%s4 + $0x10] sm:$0xff]
      %v313 = vld [vmem:[%s2] sm:$0xff]
      %v314 = vld [vmem:[%s2 + $0x8] sm:$0xff]
      %v315 = vld [vmem:[%s2 + $0x10] sm:$0xff]
      %v316 = vld [vmem:[%s301] sm:$0xff]
      %v317 = vld [vmem:[%s3] sm:$0xff]
      %v318 = vld [vmem:[%s3 + $0x8] sm:$0xff]
      %v319 = vld [vmem:[%s3 + $0x10] sm:$0xff]
      %321 = vset.pattern.permute.xlu0 0
      %322 = vperm.xlu0 %321, %v317
      %v323 = vpop.permute.xlu0 %322
      %326 = vset.pattern.permute.xlu0 0
      %327 = vperm.xlu0 %326, %v318
      %v328 = vpop.permute.xlu0 %327
      %331 = vset.pattern.permute.xlu0 0
      %332 = vperm.xlu0 %331, %v319
      %v333 = vpop.permute.xlu0 %332
      %336 = vst [vmem:[#allocation1] ss:$2 sm:$0xff] %v316
      %v337 = vld.sshfl [vmem:[#allocation1] sm:$0xff pattern:$0x75316420]
      %v338 = vld.sshfl [vmem:[#allocation1 + $0x8] sm:$0xff pattern:$0x75316420]
      %vm339 = vcmask 31744
      %v341 = vsel %vm339, %v313, 0
      %v344 = vsel %vm339, %v314, 0
      %v347 = vsel %vm339, %v315, 0
      %vm349 = vcmask 1043456
      %v350 = vsel %vm349, %v337, 0
      %v352 = vsel %vm349, %v338, 0
      %354 = vmatpush.msra.mxu0 0.0
      %355 = vmatpush.msra.mxu0 0.0
      %356 = vmatpush.msra.mxu0 0.0
      %357 = vmatpush.msra.mxu0 0.0
      %358 = vmatpush.msra.mxu0 0.0
      %359 = vmatpush.msra.mxu0 0.0
      %360 = vmatpush.msra.mxu0 0.0
      %361 = vmatpush.msra.mxu0 0.0
      %362 = vmatpush.msra.mxu0 0.0
      %363 = vmatpush.msra.mxu0 0.0
      %364 = vmatpush.msra.mxu0 0.0
      %365 = vmatpush.msra.mxu0 0.0
      %366 = vmatpush.msra.mxu0 0.0
      %367 = vmatpush.msra.mxu0 0.0
      %368 = vmatpush.msra.mxu0 0.0
      %369 = vmatpush.msra.mxu0 %v350
      %370 = vmatmul.f32.gmra.mxu0 %v341
      %v371 = vpop.f32.mrf.mxu0
      %v372 = vadd.f32 %v323, %v371
      %373 = vmatmul.f32.gmra.mxu0 %v344
      %v374 = vpop.f32.mrf.mxu0
      %v375 = vadd.f32 %v328, %v374
      %376 = vmatmul.f32.gmra.mxu0 %v347
      %v377 = vpop.f32.mrf.mxu0
      %v378 = vadd.f32 %v333, %v377
      %379 = vdwg.mxu0
      %380 = vmatpush.msra.mxu0 0.0
      %381 = vmatpush.msra.mxu0 0.0
      %382 = vmatpush.msra.mxu0 0.0
      %383 = vmatpush.msra.mxu0 0.0
      %384 = vmatpush.msra.mxu0 0.0
      %385 = vmatpush.msra.mxu0 0.0
      %386 = vmatpush.msra.mxu0 0.0
      %387 = vmatpush.msra.mxu0 0.0
      %388 = vmatpush.msra.mxu0 0.0
      %389 = vmatpush.msra.mxu0 0.0
      %390 = vmatpush.msra.mxu0 0.0
      %391 = vmatpush.msra.mxu0 0.0
      %392 = vmatpush.msra.mxu0 0.0
      %393 = vmatpush.msra.mxu0 0.0
      %394 = vmatpush.msra.mxu0 0.0
      %395 = vmatpush.msra.mxu0 %v352
      %396 = vmatmul.f32.gmra.mxu0 %v341
      %v397 = vpop.f32.mrf.mxu0
      %v398 = vadd.f32 %v323, %v397
      %399 = vmatmul.f32.gmra.mxu0 %v344
      %v400 = vpop.f32.mrf.mxu0
      %v401 = vadd.f32 %v328, %v400
      %402 = vmatmul.f32.gmra.mxu0 %v347
      %v403 = vpop.f32.mrf.mxu0
      %v404 = vadd.f32 %v333, %v403
      %405 = vdwg.mxu0
      %v406 = vmax.f32 %v372, 0.0
      %v407 = vmax.f32 %v398, 0.0
      %v408 = vmax.f32 %v375, 0.0
      %v409 = vmax.f32 %v401, 0.0
      %v410 = vmax.f32 %v378, 0.0
      %v411 = vmax.f32 %v404, 0.0
      %v412 = vmin.f32 %v406, 6.0
      %v413 = vmin.f32 %v407, 6.0
      %v414 = vmin.f32 %v408, 6.0
      %v415 = vmin.f32 %v409, 6.0
      %v416 = vmin.f32 %v410, 6.0
      %v417 = vmin.f32 %v411, 6.0
      %418 = vrot.lane.b32.xlu0 %v412, 1
      %v419 = vpop.permute.xlu0 %418
      %420 = vrot.lane.b32.xlu0 %v414, 1
      %v421 = vpop.permute.xlu0 %420
      %422 = vrot.lane.b32.xlu0 %v416, 1
      %v423 = vpop.permute.xlu0 %422
      %424 = vrot.lane.b32.xlu0 %v413, 1
      %v425 = vpop.permute.xlu0 %424
      %426 = vrot.lane.b32.xlu0 %v415, 1
      %v427 = vpop.permute.xlu0 %426
      %428 = vrot.lane.b32.xlu0 %v417, 1
      %v429 = vpop.permute.xlu0 %428
      %v430 = vlaneseq
      %v431 = vand.u32 %v430, 127
      %vm432 = vcmp.lt.s32.totalorder %v431, 1
      %v433 = vsel %vm432, %v419, %v425
      %v434 = vsel %vm432, %v421, %v427
      %v435 = vsel %vm432, %v423, %v429
      %v436 = vsel %vm432, %v425, %v419
      %v437 = vsel %vm432, %v427, %v421
      %v438 = vsel %vm432, %v429, %v423
      %v440 = vperm.slane %v309, 0
      %v441 = vperm.slane %v309, 4
      %v444 = vperm.slane %v440, 0
      %v445 = vperm.slane %v441, 0
      %v446 = vmul.f32 %v436, %v444
      %v447 = vmul.f32 %v433, %v445
      %v448 = vmul.f32 %v437, %v444
      %v449 = vmul.f32 %v434, %v445
      %v450 = vmul.f32 %v438, %v444
      %v451 = vmul.f32 %v435, %v445
      %452 = vrot.lane.b32.xlu0 %v412, 127
      %v453 = vpop.permute.xlu0 %452
      %454 = vrot.lane.b32.xlu0 %v414, 127
      %v455 = vpop.permute.xlu0 %454
      %456 = vrot.lane.b32.xlu0 %v416, 127
      %v457 = vpop.permute.xlu0 %456
      %458 = vrot.lane.b32.xlu0 %v413, 127
      %v459 = vpop.permute.xlu0 %458
      %460 = vrot.lane.b32.xlu0 %v415, 127
      %v461 = vpop.permute.xlu0 %460
      %462 = vrot.lane.b32.xlu0 %v417, 127
      %v463 = vpop.permute.xlu0 %462
      %vm464 = vcmp.lt.s32.totalorder %v431, 127
      %v465 = vsel %vm464, %v453, %v459
      %v466 = vsel %vm464, %v455, %v461
      %v467 = vsel %vm464, %v457, %v463
      %v468 = vsel %vm464, %v459, %v453
      %v469 = vsel %vm464, %v461, %v455
      %v470 = vsel %vm464, %v463, %v457
      %v471 = vperm.slane %v309, 1
      %v472 = vperm.slane %v309, 5
      %v475 = vperm.slane %v471, 1
      %v476 = vperm.slane %v472, 1
      %v477 = vmul.f32 %v465, %v475
      %v478 = vmul.f32 %v468, %v476
      %v479 = vmul.f32 %v466, %v475
      %v480 = vmul.f32 %v469, %v476
      %v481 = vmul.f32 %v467, %v475
      %v482 = vmul.f32 %v470, %v476
      %484 = vset.pattern.permute.xlu0 0
      %485 = vperm.xlu0 %484, %v310
      %v486 = vpop.permute.xlu0 %485
      %489 = vset.pattern.permute.xlu0 0
      %490 = vperm.xlu0 %489, %v311
      %v491 = vpop.permute.xlu0 %490
      %494 = vset.pattern.permute.xlu0 0
      %495 = vperm.xlu0 %494, %v312
      %v496 = vpop.permute.xlu0 %495
      %v498 = vmul.f32 %v486, %v446
      %v499 = vmul.f32 %v486, %v447
      %v500 = vmul.f32 %v491, %v448
      %v501 = vmul.f32 %v491, %v449
      %v502 = vmul.f32 %v496, %v450
      %v503 = vmul.f32 %v496, %v451
      %504 = vset.pattern.permute.xlu0 1
      %505 = vperm.xlu0 %504, %v310
      %v506 = vpop.permute.xlu0 %505
      %508 = vset.pattern.permute.xlu0 1
      %509 = vperm.xlu0 %508, %v311
      %v510 = vpop.permute.xlu0 %509
      %512 = vset.pattern.permute.xlu0 1
      %513 = vperm.xlu0 %512, %v312
      %v514 = vpop.permute.xlu0 %513
      %v516 = vmul.f32 %v506, %v412
      %v517 = vmul.f32 %v506, %v413
      %v518 = vmul.f32 %v510, %v414
      %v519 = vmul.f32 %v510, %v415
      %v520 = vmul.f32 %v514, %v416
      %v521 = vmul.f32 %v514, %v417
      %v522 = vadd.f32 %v498, %v516
      %v523 = vadd.f32 %v499, %v517
      %v524 = vadd.f32 %v500, %v518
      %v525 = vadd.f32 %v501, %v519
      %v526 = vadd.f32 %v502, %v520
      %v527 = vadd.f32 %v503, %v521
      %528 = vset.pattern.permute.xlu0 2
      %529 = vperm.xlu0 %528, %v310
      %v530 = vpop.permute.xlu0 %529
      %532 = vset.pattern.permute.xlu0 2
      %533 = vperm.xlu0 %532, %v311
      %v534 = vpop.permute.xlu0 %533
      %536 = vset.pattern.permute.xlu0 2
      %537 = vperm.xlu0 %536, %v312
      %v538 = vpop.permute.xlu0 %537
      %v540 = vmul.f32 %v530, %v477
      %v541 = vmul.f32 %v530, %v478
      %v542 = vmul.f32 %v534, %v479
      %v543 = vmul.f32 %v534, %v480
      %v544 = vmul.f32 %v538, %v481
      %v545 = vmul.f32 %v538, %v482
      %v546 = vadd.f32 %v522, %v540
      %v547 = vadd.f32 %v523, %v541
      %v548 = vadd.f32 %v524, %v542
      %v549 = vadd.f32 %v525, %v543
      %v550 = vadd.f32 %v526, %v544
      %v551 = vadd.f32 %v527, %v545
      %552 = vset.pattern.permute.xlu0 3
      %553 = vperm.xlu0 %552, %v310
      %v554 = vpop.permute.xlu0 %553
      %556 = vset.pattern.permute.xlu0 3
      %557 = vperm.xlu0 %556, %v311
      %v558 = vpop.permute.xlu0 %557
      %560 = vset.pattern.permute.xlu0 3
      %561 = vperm.xlu0 %560, %v312
      %v562 = vpop.permute.xlu0 %561
      %v564 = vmul.f32 %v554, %v446
      %v565 = vmul.f32 %v554, %v447
      %v566 = vmul.f32 %v558, %v448
      %v567 = vmul.f32 %v558, %v449
      %v568 = vmul.f32 %v562, %v450
      %v569 = vmul.f32 %v562, %v451
      %570 = vset.pattern.permute.xlu0 4
      %571 = vperm.xlu0 %570, %v310
      %v572 = vpop.permute.xlu0 %571
      %574 = vset.pattern.permute.xlu0 4
      %575 = vperm.xlu0 %574, %v311
      %v576 = vpop.permute.xlu0 %575
      %578 = vset.pattern.permute.xlu0 4
      %579 = vperm.xlu0 %578, %v312
      %v580 = vpop.permute.xlu0 %579
      %v582 = vmul.f32 %v572, %v412
      %v583 = vmul.f32 %v572, %v413
      %v584 = vmul.f32 %v576, %v414
      %v585 = vmul.f32 %v576, %v415
      %v586 = vmul.f32 %v580, %v416
      %v587 = vmul.f32 %v580, %v417
      %v588 = vadd.f32 %v564, %v582
      %v589 = vadd.f32 %v565, %v583
      %v590 = vadd.f32 %v566, %v584
      %v591 = vadd.f32 %v567, %v585
      %v592 = vadd.f32 %v568, %v586
      %v593 = vadd.f32 %v569, %v587
      %594 = vset.pattern.permute.xlu0 5
      %595 = vperm.xlu0 %594, %v310
      %v596 = vpop.permute.xlu0 %595
      %598 = vset.pattern.permute.xlu0 5
      %599 = vperm.xlu0 %598, %v311
      %v600 = vpop.permute.xlu0 %599
      %602 = vset.pattern.permute.xlu0 5
      %603 = vperm.xlu0 %602, %v312
      %v604 = vpop.permute.xlu0 %603
      %v606 = vmul.f32 %v596, %v477
      %v607 = vmul.f32 %v596, %v478
      %v608 = vmul.f32 %v600, %v479
      %v609 = vmul.f32 %v600, %v480
      %v610 = vmul.f32 %v604, %v481
      %v611 = vmul.f32 %v604, %v482
      %v612 = vadd.f32 %v588, %v606
      %v613 = vadd.f32 %v589, %v607
      %v614 = vadd.f32 %v590, %v608
      %v615 = vadd.f32 %v591, %v609
      %v616 = vadd.f32 %v592, %v610
      %v617 = vadd.f32 %v593, %v611
      %618 = vset.pattern.permute.xlu0 6
      %619 = vperm.xlu0 %618, %v310
      %v620 = vpop.permute.xlu0 %619
      %622 = vset.pattern.permute.xlu0 6
      %623 = vperm.xlu0 %622, %v311
      %v624 = vpop.permute.xlu0 %623
      %626 = vset.pattern.permute.xlu0 6
      %627 = vperm.xlu0 %626, %v312
      %v628 = vpop.permute.xlu0 %627
      %v630 = vmul.f32 %v620, %v446
      %v631 = vmul.f32 %v620, %v447
      %v632 = vmul.f32 %v624, %v448
      %v633 = vmul.f32 %v624, %v449
      %v634 = vmul.f32 %v628, %v450
      %v635 = vmul.f32 %v628, %v451
      %636 = vset.pattern.permute.xlu0 7
      %637 = vperm.xlu0 %636, %v310
      %v638 = vpop.permute.xlu0 %637
      %640 = vset.pattern.permute.xlu0 7
      %641 = vperm.xlu0 %640, %v311
      %v642 = vpop.permute.xlu0 %641
      %644 = vset.pattern.permute.xlu0 7
      %645 = vperm.xlu0 %644, %v312
      %v646 = vpop.permute.xlu0 %645
      %v648 = vmul.f32 %v638, %v412
      %v649 = vmul.f32 %v638, %v413
      %v650 = vmul.f32 %v642, %v414
      %v651 = vmul.f32 %v642, %v415
      %v652 = vmul.f32 %v646, %v416
      %v653 = vmul.f32 %v646, %v417
      %v654 = vadd.f32 %v630, %v648
      %v655 = vadd.f32 %v631, %v649
      %v656 = vadd.f32 %v632, %v650
      %v657 = vadd.f32 %v633, %v651
      %v658 = vadd.f32 %v634, %v652
      %v659 = vadd.f32 %v635, %v653
      %660 = vset.pattern.permute.xlu0 8
      %661 = vperm.xlu0 %660, %v310
      %v662 = vpop.permute.xlu0 %661
      %664 = vset.pattern.permute.xlu0 8
      %665 = vperm.xlu0 %664, %v311
      %v666 = vpop.permute.xlu0 %665
      %668 = vset.pattern.permute.xlu0 8
      %669 = vperm.xlu0 %668, %v312
      %v670 = vpop.permute.xlu0 %669
      %v672 = vmul.f32 %v662, %v477
      %v673 = vmul.f32 %v662, %v478
      %v674 = vmul.f32 %v666, %v479
      %v675 = vmul.f32 %v666, %v480
      %v676 = vmul.f32 %v670, %v481
      %v677 = vmul.f32 %v670, %v482
      %v678 = vadd.f32 %v654, %v672
      %v679 = vadd.f32 %v655, %v673
      %v680 = vadd.f32 %v656, %v674
      %v681 = vadd.f32 %v657, %v675
      %v682 = vadd.f32 %v658, %v676
      %v683 = vadd.f32 %v659, %v677
      %684 = vrot.lane.b32.xlu0 %v546, 16
      %v685 = vpop.permute.xlu0 %684
      %686 = vrot.lane.b32.xlu0 %v548, 16
      %v687 = vpop.permute.xlu0 %686
      %688 = vrot.lane.b32.xlu0 %v550, 16
      %v689 = vpop.permute.xlu0 %688
      %690 = vrot.lane.b32.xlu0 %v547, 16
      %v691 = vpop.permute.xlu0 %690
      %692 = vrot.lane.b32.xlu0 %v549, 16
      %v693 = vpop.permute.xlu0 %692
      %694 = vrot.lane.b32.xlu0 %v551, 16
      %v695 = vpop.permute.xlu0 %694
      %vm696 = vcmp.lt.s32.totalorder %v431, 16
      %v697 = vsel %vm696, %v685, %v691
      %v698 = vsel %vm696, %v687, %v693
      %v699 = vsel %vm696, %v689, %v695
      %v700 = vsel %vm696, %v691, %v685
      %v701 = vsel %vm696, %v693, %v687
      %v702 = vsel %vm696, %v695, %v689
      %v703 = vperm.slane %v309, 2
      %v704 = vperm.slane %v309, 6
      %v707 = vperm.slane %v703, 2
      %v708 = vperm.slane %v704, 2
      %v709 = vmul.f32 %v700, %v707
      %v710 = vmul.f32 %v697, %v708
      %v711 = vmul.f32 %v701, %v707
      %v712 = vmul.f32 %v698, %v708
      %v713 = vmul.f32 %v702, %v707
      %v714 = vmul.f32 %v699, %v708
      %v715 = vadd.f32 %v612, %v709
      %v716 = vadd.f32 %v613, %v710
      %v717 = vadd.f32 %v614, %v711
      %v718 = vadd.f32 %v615, %v712
      %v719 = vadd.f32 %v616, %v713
      %v720 = vadd.f32 %v617, %v714
      %721 = vrot.lane.b32.xlu0 %v678, 112
      %v722 = vpop.permute.xlu0 %721
      %723 = vrot.lane.b32.xlu0 %v680, 112
      %v724 = vpop.permute.xlu0 %723
      %725 = vrot.lane.b32.xlu0 %v682, 112
      %v726 = vpop.permute.xlu0 %725
      %727 = vrot.lane.b32.xlu0 %v679, 112
      %v728 = vpop.permute.xlu0 %727
      %729 = vrot.lane.b32.xlu0 %v681, 112
      %v730 = vpop.permute.xlu0 %729
      %731 = vrot.lane.b32.xlu0 %v683, 112
      %v732 = vpop.permute.xlu0 %731
      %vm733 = vcmp.lt.s32.totalorder %v431, 112
      %v734 = vsel %vm733, %v722, %v728
      %v735 = vsel %vm733, %v724, %v730
      %v736 = vsel %vm733, %v726, %v732
      %v737 = vsel %vm733, %v728, %v722
      %v738 = vsel %vm733, %v730, %v724
      %v739 = vsel %vm733, %v732, %v726
      %v740 = vperm.slane %v309, 3
      %v741 = vperm.slane %v309, 7
      %v744 = vperm.slane %v740, 3
      %v745 = vperm.slane %v741, 3
      %v746 = vmul.f32 %v734, %v744
      %v747 = vmul.f32 %v737, %v745
      %v748 = vmul.f32 %v735, %v744
      %v749 = vmul.f32 %v738, %v745
      %v750 = vmul.f32 %v736, %v744
      %v751 = vmul.f32 %v739, %v745
      %v752 = vadd.f32 %v715, %v746
      %v753 = vadd.f32 %v716, %v747
      %v754 = vadd.f32 %v717, %v748
      %v755 = vadd.f32 %v718, %v749
      %v756 = vadd.f32 %v719, %v750
      %v757 = vadd.f32 %v720, %v751
      %v758 = vld [vmem:[%s5] sm:$0xff]
      %v759 = vld [vmem:[%s5 + $0x8] sm:$0xff]
      %v760 = vld [vmem:[%s5 + $0x10] sm:$0xff]
      %762 = vset.pattern.permute.xlu0 0
      %763 = vperm.xlu0 %762, %v758
      %v764 = vpop.permute.xlu0 %763
      %767 = vset.pattern.permute.xlu0 0
      %768 = vperm.xlu0 %767, %v759
      %v769 = vpop.permute.xlu0 %768
      %772 = vset.pattern.permute.xlu0 0
      %773 = vperm.xlu0 %772, %v760
      %v774 = vpop.permute.xlu0 %773
      %v776 = vadd.f32 %v752, %v764
      %v777 = vadd.f32 %v753, %v764
      %v778 = vadd.f32 %v754, %v769
      %v779 = vadd.f32 %v755, %v769
      %v780 = vadd.f32 %v756, %v774
      %v781 = vadd.f32 %v757, %v774
      %v782 = vmax.f32 %v776, 0.0
      %v783 = vmax.f32 %v777, 0.0
      %v784 = vmax.f32 %v778, 0.0
      %v785 = vmax.f32 %v779, 0.0
      %v786 = vmax.f32 %v780, 0.0
      %v787 = vmax.f32 %v781, 0.0
      %v788 = vmin.f32 %v782, 6.0
      %v789 = vmin.f32 %v783, 6.0
      %v790 = vmin.f32 %v784, 6.0
      %v791 = vmin.f32 %v785, 6.0
      %v792 = vmin.f32 %v786, 6.0
      %v793 = vmin.f32 %v787, 6.0
      %v794 = vld [vmem:[%s6] sm:$0xff]
      %v795 = vld [vmem:[%s7] sm:$0xff]
      %797 = vset.pattern.permute.xlu0 0
      %798 = vperm.xlu0 %797, %v795
      %v799 = vpop.permute.xlu0 %798
      %vm801 = vcmask 195584
      %v803 = vsel %vm801, %v794, 0
      %805 = vmatpush.msra.mxu0 0.0
      %806 = vmatpush.msra.mxu0 0.0
      %807 = vmatpush.msra.mxu0 0.0
      %808 = vmatpush.msra.mxu0 0.0
      %809 = vmatpush.msra.mxu0 0.0
      %810 = vmatpush.msra.mxu0 0.0
      %811 = vmatpush.msra.mxu0 0.0
      %812 = vmatpush.msra.mxu0 0.0
      %813 = vmatpush.msra.mxu0 0.0
      %814 = vmatpush.msra.mxu0 0.0
      %815 = vmatpush.msra.mxu0 0.0
      %816 = vmatpush.msra.mxu0 0.0
      %817 = vmatpush.msra.mxu0 0.0
      %818 = vmatpush.msra.mxu0 %v792
      %819 = vmatpush.msra.mxu0 %v790
      %820 = vmatpush.msra.mxu0 %v788
      %821 = vmatmul.f32.gmra.mxu0 %v803
      %v822 = vpop.f32.mrf.mxu0
      %v823 = vadd.f32 %v799, %v822
      %824 = vdwg.mxu0
      %825 = vmatpush.msra.mxu0 0.0
      %826 = vmatpush.msra.mxu0 0.0
      %827 = vmatpush.msra.mxu0 0.0
      %828 = vmatpush.msra.mxu0 0.0
      %829 = vmatpush.msra.mxu0 0.0
      %830 = vmatpush.msra.mxu0 0.0
      %831 = vmatpush.msra.mxu0 0.0
      %832 = vmatpush.msra.mxu0 0.0
      %833 = vmatpush.msra.mxu0 0.0
      %834 = vmatpush.msra.mxu0 0.0
      %835 = vmatpush.msra.mxu0 0.0
      %836 = vmatpush.msra.mxu0 0.0
      %837 = vmatpush.msra.mxu0 0.0
      %838 = vmatpush.msra.mxu0 %v793
      %839 = vmatpush.msra.mxu0 %v791
      %840 = vmatpush.msra.mxu0 %v789
      %841 = vmatmul.f32.gmra.mxu0 %v803
      %v842 = vpop.f32.mrf.mxu0
      %v843 = vadd.f32 %v799, %v842
      %844 = vdwg.mxu0
      %845 = vst [vmem:[%s307] sm:$0xff] %v823
      %846 = vst [vmem:[%s307 + $0x8] sm:$0xff] %v843
      %s847 = smul.u32 2, %s19
      %p848 = scmp.lt.s32.totalorder %s847, 3
      %s849 = scalar_select %p848, %s847, 3
      %s850 = smul.addr %s849, 8
      %s851 = scalar_lea.vmem %s8, %s850
      // Predicated region
      $region53: #{_lambda_.1} parent=51 // pred_check
        %p852 = pneg %p210
      $region54: #{_lambda_.1} parent=51 // pred_check_branch
        %854 = sbr.rel (%p852) target = $region56
      $region55: #{_lambda_.1} parent=51 // pred_region
        %s855 = smul.u32 2, %s19
      $region56: #{_lambda_.1} parent=51 // pred_fallthru
        _
    $region52: #{_lambda_.1} parent=5 // pred_fallthru
      _
    %p856 = scmp.le.s32.totalorder 2, %s14
    // Predicated region
    $region57: #{_lambda_.1} parent=5 // pred_check
      %p857 = pneg %p856
    $region58: #{_lambda_.1} parent=5 // pred_check_branch
      %859 = sbr.rel (%p857) target = $region60
    $region59: #{_lambda_.1} parent=5 // pred_region
      %s860 = ssub.s32 %s14, 2
      // Predicated region
      $region61: #{_lambda_.1} parent=59 // pred_check
        %p861 = pneg %p216
      $region62: #{_lambda_.1} parent=59 // pred_check_branch
        %863 = sbr.rel (%p861) target = $region64
      $region63: #{_lambda_.1} parent=59 // pred_region
        %s864 = smul.u32 2, %s20
        %p865 = scmp.lt.s32.totalorder %s864, 3
        %s866 = scalar_select %p865, %s864, 3
        %s867 = smul.addr %s866, 8
        %s868 = scalar_lea.vmem %s8, %s867
      $region64: #{_lambda_.1} parent=59 // pred_fallthru
        _
    $region60: #{_lambda_.1} parent=5 // pred_fallthru
      _
  $region6: #{_lambda_.1} parent=0 // loop_footer
    %s18 = sadd.s32 1, %s14
  $region7: #{_lambda_.1} parent=0 // loop_footer_branch
    %13 = sbr.rel target = $region3
  $region8: #{_lambda_.1} parent=0 // loop_exit
    _

</llo_original>
